<compile_context>
chip_gen: v5e
topology: v5e:2x2
jax: 0.10.0
libtpu: 0.0.40
codegen_flags: <defaults>
</compile_context>

<pallas_src>
import jax
import jax.numpy as jnp
import numpy as np
from jax.experimental import pallas as pl
from jax.experimental.pallas import tpu as pltpu

N, C_IN, H, W = 1, 128, 7, 7
C_OUT = 32
KH = KW = 3
EPS = 1e-5
HW = H * W                 # 49 real spatial positions
HW_PAD = 128               # padded to a full lane width
INV_COUNT = 1.0 / float(N * HW)


def bn_relu_conv_kernel(x_ref, gamma_ref, beta_ref, w_ref, mask_ref, o_ref):
    # x_ref:     (C_IN, HW_PAD)      channels x spatial; columns >= HW are zero
    # gamma_ref: (C_IN, 1)
    # beta_ref:  (C_IN, 1)
    # w_ref:     (KH*KW, C_OUT, C_IN)
    # mask_ref:  (KH*KW, 1, HW_PAD)  1.0 where the tap is in-bounds for that pixel
    # o_ref:     (C_OUT, HW_PAD)
    x = x_ref[...]

    # --- BatchNorm (training mode: batch stats, biased variance), one pass ---
    # Zero-padded columns contribute nothing to either sum.
    mean = jnp.sum(x, axis=1, keepdims=True) * INV_COUNT           # (C_IN, 1)
    mean_sq = jnp.sum(x * x, axis=1, keepdims=True) * INV_COUNT    # (C_IN, 1)
    var = mean_sq - mean * mean
    scale = gamma_ref[...] * jax.lax.rsqrt(var + EPS)              # (C_IN, 1)
    shift = beta_ref[...] - mean * scale                           # (C_IN, 1)

    # --- fused affine + ReLU ---
    y = jnp.maximum(x * scale + shift, 0.0)                        # (C_IN, HW_PAD)

    # --- 3x3 conv as 9 whole-image matmuls with lane-rolled activations ---
    acc = jnp.zeros((C_OUT, HW_PAD), jnp.float32)
    for kh in range(KH):
        for kw in range(KW):
            t = kh * KW + kw
            s = (kh - 1) * W + (kw - 1)        # flat spatial offset of this tap
            if s == 0:
                shifted = y
            else:
                # shifted[:, p] = y[:, p + s]  (np.roll semantics)
                shifted = pltpu.roll(y, shift=(-s) % HW_PAD, axis=1)
            contrib = jnp.dot(w_ref[t], shifted,
                              preferred_element_type=jnp.float32)  # (C_OUT, HW_PAD)
            acc = acc + contrib * mask_ref[t]                      # zero OOB taps
    o_ref[...] = acc                                               # single dense store


def _make_tap_masks():
    p = np.arange(HW_PAD)
    h = p // W
    w = p % W
    masks = np.zeros((KH * KW, 1, HW_PAD), np.float32)
    for kh in range(KH):
        for kw in range(KW):
            hh = h + kh - 1
            ww = w + kw - 1
            valid = (p < HW) & (hh >= 0) & (hh < H) & (ww >= 0) & (ww < W)
            masks[kh * KW + kw, 0, :] = valid.astype(np.float32)
    return jnp.asarray(masks)


_TAP_MASKS = _make_tap_masks()


@jax.jit
def bn_relu_conv(x_nchw, gamma, beta, w_oihw):
    n, c, h, w = x_nchw.shape
    # N=1: NCHW -> (C, H*W) is a pure reshape; pad spatial axis to 128 lanes.
    x_slab = x_nchw.reshape(c, h * w)
    x_slab = jnp.pad(x_slab, ((0, 0), (0, HW_PAD - h * w)))
    w_slab = jnp.transpose(w_oihw, (2, 3, 0, 1)).reshape(KH * KW, C_OUT, c)
    gamma2 = gamma.reshape(c, 1).astype(jnp.float32)
    beta2 = beta.reshape(c, 1).astype(jnp.float32)

    vmem = pl.BlockSpec(memory_space=pltpu.MemorySpace.VMEM)
    # Single invocation, no grid: everything (<250 KB) lives in VMEM.
    # TODO(synk): if N or H*W grows, add a row-block grid with
    # dimension_semantics=("parallel",) and a separate BN-stats pass (v7x 2-TC).
    out_slab = pl.pallas_call(
        bn_relu_conv_kernel,
        out_shape=jax.ShapeDtypeStruct((C_OUT, HW_PAD), jnp.float32),
        in_specs=[vmem, vmem, vmem, vmem, vmem],
        out_specs=vmem,
    )(x_slab, gamma2, beta2, w_slab, _TAP_MASKS)

    # (C_OUT, HW) -> NCHW is again a pure reshape.
    return out_slab[:, :h * w].reshape(n, C_OUT, h, w)


def reference_forward(x, gamma, beta, w):
    # Pure-JAX reference mirroring the PyTorch module (training-mode BN).
    mean = jnp.mean(x, axis=(0, 2, 3), keepdims=True)
    var = jnp.mean((x - mean) ** 2, axis=(0, 2, 3), keepdims=True)
    y = (x - mean) * jax.lax.rsqrt(var + EPS)
    y = y * gamma.reshape(1, -1, 1, 1) + beta.reshape(1, -1, 1, 1)
    y = jnp.maximum(y, 0.0)
    return jax.lax.conv_general_dilated(
        y, w, window_strides=(1, 1), padding=((1, 1), (1, 1)),
        dimension_numbers=("NCHW", "OIHW", "NCHW"))


if __name__ == "__main__":
    key = jax.random.PRNGKey(0)
    k1, k2, k3, k4 = jax.random.split(key, 4)

    x = jax.random.normal(k1, (N, C_IN, H, W), jnp.float32)
    gamma = jax.random.uniform(k2, (C_IN,), jnp.float32, 0.5, 1.5)
    beta = 0.1 * jax.random.normal(k3, (C_IN,), jnp.float32)
    w = jax.random.normal(k4, (C_OUT, C_IN, KH, KW), jnp.float32)
    w = w * (1.0 / (C_IN * KH * KW) ** 0.5)

    out = jax.block_until_ready(bn_relu_conv(x, gamma, beta, w))
    ref = jax.block_until_ready(reference_forward(x, gamma, beta, w))

    assert out.shape == (N, C_OUT, H, W), out.shape
    assert jnp.allclose(out, ref, atol=5e-3, rtol=5e-3), float(
        jnp.max(jnp.abs(out - ref)))

    print("KERNEL_OK")
</pallas_src>

<mosaic_0001>
module attributes {stable_mosaic.version = 11 : i64} {
  func.func @bn_relu_conv_kernel(%arg0: memref<128x128xf32, #tpu.memory_space<vmem>>, %arg1: memref<128x1xf32, #tpu.memory_space<vmem>>, %arg2: memref<128x1xf32, #tpu.memory_space<vmem>>, %arg3: memref<9x32x128xf32, #tpu.memory_space<vmem>>, %arg4: memref<9x1x128xf32, #tpu.memory_space<vmem>>, %arg5: memref<32x128xf32, #tpu.memory_space<vmem>>) attributes {dimension_semantics = [], scalar_prefetch = 0 : i64, scratch_operands = 0 : i64, tpu.core_type = #tpu.core_type<tc>} {
    %c0 = arith.constant 0 : index
    %c0_0 = arith.constant 0 : index
    %0 = vector.load %arg0[%c0, %c0_0] : memref<128x128xf32, #tpu.memory_space<vmem>>, vector<128x128xf32>
    %cst = arith.constant dense<0.000000e+00> : vector<128xf32>
    %1 = vector.multi_reduction <add>, %0, %cst [1] : vector<128x128xf32> to vector<128xf32>
    %2 = vector.shape_cast %1 : vector<128xf32> to vector<128x1xf32>
    %cst_1 = arith.constant 0.0204081628 : f32
    %3 = vector.broadcast %cst_1 : f32 to vector<128x1xf32>
    %4 = arith.mulf %2, %3 : vector<128x1xf32>
    %5 = arith.mulf %0, %0 : vector<128x128xf32>
    %cst_2 = arith.constant dense<0.000000e+00> : vector<128xf32>
    %6 = vector.multi_reduction <add>, %5, %cst_2 [1] : vector<128x128xf32> to vector<128xf32>
    %7 = vector.shape_cast %6 : vector<128xf32> to vector<128x1xf32>
    %cst_3 = arith.constant 0.0204081628 : f32
    %8 = vector.broadcast %cst_3 : f32 to vector<128x1xf32>
    %9 = arith.mulf %7, %8 : vector<128x1xf32>
    %10 = arith.mulf %4, %4 : vector<128x1xf32>
    %11 = arith.subf %9, %10 : vector<128x1xf32>
    %c0_4 = arith.constant 0 : index
    %c0_5 = arith.constant 0 : index
    %12 = vector.load %arg1[%c0_4, %c0_5] : memref<128x1xf32, #tpu.memory_space<vmem>>, vector<128x1xf32>
    %cst_6 = arith.constant 9.99999974E-6 : f32
    %13 = vector.broadcast %cst_6 : f32 to vector<128x1xf32>
    %14 = arith.addf %11, %13 : vector<128x1xf32>
    %15 = math.rsqrt %14 : vector<128x1xf32>
    %16 = arith.mulf %12, %15 : vector<128x1xf32>
    %c0_7 = arith.constant 0 : index
    %c0_8 = arith.constant 0 : index
    %17 = vector.load %arg2[%c0_7, %c0_8] : memref<128x1xf32, #tpu.memory_space<vmem>>, vector<128x1xf32>
    %18 = arith.mulf %4, %16 : vector<128x1xf32>
    %19 = arith.subf %17, %18 : vector<128x1xf32>
    %20 = vector.broadcast %16 : vector<128x1xf32> to vector<128x128xf32>
    %21 = arith.mulf %0, %20 : vector<128x128xf32>
    %22 = vector.broadcast %19 : vector<128x1xf32> to vector<128x128xf32>
    %23 = arith.addf %21, %22 : vector<128x128xf32>
    %cst_9 = arith.constant 0.000000e+00 : f32
    %24 = vector.broadcast %cst_9 : f32 to vector<128x128xf32>
    %25 = arith.maximumf %23, %24 : vector<128x128xf32>
    %cst_10 = arith.constant 0.000000e+00 : f32
    %26 = vector.broadcast %cst_10 : f32 to vector<32x128xf32>
    %c8_i32 = arith.constant 8 : i32
    %27 = tpu.dynamic_rotate %25 by %c8_i32 dim 1 : vector<128x128xf32>, i32 -> vector<128x128xf32>
    %c0_11 = arith.constant 0 : index
    %c0_12 = arith.constant 0 : index
    %c0_13 = arith.constant 0 : index
    %28 = vector.load %arg3[%c0_11, %c0_12, %c0_13] : memref<9x32x128xf32, #tpu.memory_space<vmem>>, vector<1x32x128xf32>
    %29 = vector.shape_cast %28 : vector<1x32x128xf32> to vector<32x128xf32>
    %cst_14 = arith.constant dense<0.000000e+00> : vector<32x128xf32>
    %30 = tpu.matmul %29, %27, %cst_14 {dimension_numbers = #tpu.dot_dimension_numbers<[1], [0], [0], [1], [0, 0, 1, 1], [], []>} : vector<32x128xf32>, vector<128x128xf32>, vector<32x128xf32> -> vector<32x128xf32>
    %c0_15 = arith.constant 0 : index
    %c0_16 = arith.constant 0 : index
    %c0_17 = arith.constant 0 : index
    %31 = vector.load %arg4[%c0_15, %c0_16, %c0_17] : memref<9x1x128xf32, #tpu.memory_space<vmem>>, vector<1x1x128xf32>
    %32 = vector.shape_cast %31 : vector<1x1x128xf32> to vector<1x128xf32>
    %33 = vector.broadcast %32 : vector<1x128xf32> to vector<32x128xf32>
    %34 = arith.mulf %30, %33 : vector<32x128xf32>
    %35 = arith.addf %26, %34 : vector<32x128xf32>
    %c7_i32 = arith.constant 7 : i32
    %36 = tpu.dynamic_rotate %25 by %c7_i32 dim 1 : vector<128x128xf32>, i32 -> vector<128x128xf32>
    %c1 = arith.constant 1 : index
    %c0_18 = arith.constant 0 : index
    %c0_19 = arith.constant 0 : index
    %37 = vector.load %arg3[%c1, %c0_18, %c0_19] : memref<9x32x128xf32, #tpu.memory_space<vmem>>, vector<1x32x128xf32>
    %38 = vector.shape_cast %37 : vector<1x32x128xf32> to vector<32x128xf32>
    %cst_20 = arith.constant dense<0.000000e+00> : vector<32x128xf32>
    %39 = tpu.matmul %38, %36, %cst_20 {dimension_numbers = #tpu.dot_dimension_numbers<[1], [0], [0], [1], [0, 0, 1, 1], [], []>} : vector<32x128xf32>, vector<128x128xf32>, vector<32x128xf32> -> vector<32x128xf32>
    %c1_21 = arith.constant 1 : index
    %c0_22 = arith.constant 0 : index
    %c0_23 = arith.constant 0 : index
    %40 = vector.load %arg4[%c1_21, %c0_22, %c0_23] : memref<9x1x128xf32, #tpu.memory_space<vmem>>, vector<1x1x128xf32>
    %41 = vector.shape_cast %40 : vector<1x1x128xf32> to vector<1x128xf32>
    %42 = vector.broadcast %41 : vector<1x128xf32> to vector<32x128xf32>
    %43 = arith.mulf %39, %42 : vector<32x128xf32>
    %44 = arith.addf %35, %43 : vector<32x128xf32>
    %c6_i32 = arith.constant 6 : i32
    %45 = tpu.dynamic_rotate %25 by %c6_i32 dim 1 : vector<128x128xf32>, i32 -> vector<128x128xf32>
    %c2 = arith.constant 2 : index
    %c0_24 = arith.constant 0 : index
    %c0_25 = arith.constant 0 : index
    %46 = vector.load %arg3[%c2, %c0_24, %c0_25] : memref<9x32x128xf32, #tpu.memory_space<vmem>>, vector<1x32x128xf32>
    %47 = vector.shape_cast %46 : vector<1x32x128xf32> to vector<32x128xf32>
    %cst_26 = arith.constant dense<0.000000e+00> : vector<32x128xf32>
    %48 = tpu.matmul %47, %45, %cst_26 {dimension_numbers = #tpu.dot_dimension_numbers<[1], [0], [0], [1], [0, 0, 1, 1], [], []>} : vector<32x128xf32>, vector<128x128xf32>, vector<32x128xf32> -> vector<32x128xf32>
    %c2_27 = arith.constant 2 : index
    %c0_28 = arith.constant 0 : index
    %c0_29 = arith.constant 0 : index
    %49 = vector.load %arg4[%c2_27, %c0_28, %c0_29] : memref<9x1x128xf32, #tpu.memory_space<vmem>>, vector<1x1x128xf32>
    %50 = vector.shape_cast %49 : vector<1x1x128xf32> to vector<1x128xf32>
    %51 = vector.broadcast %50 : vector<1x128xf32> to vector<32x128xf32>
    %52 = arith.mulf %48, %51 : vector<32x128xf32>
    %53 = arith.addf %44, %52 : vector<32x128xf32>
    %c1_i32 = arith.constant 1 : i32
    %54 = tpu.dynamic_rotate %25 by %c1_i32 dim 1 : vector<128x128xf32>, i32 -> vector<128x128xf32>
    %c3 = arith.constant 3 : index
    %c0_30 = arith.constant 0 : index
    %c0_31 = arith.constant 0 : index
    %55 = vector.load %arg3[%c3, %c0_30, %c0_31] : memref<9x32x128xf32, #tpu.memory_space<vmem>>, vector<1x32x128xf32>
    %56 = vector.shape_cast %55 : vector<1x32x128xf32> to vector<32x128xf32>
    %cst_32 = arith.constant dense<0.000000e+00> : vector<32x128xf32>
    %57 = tpu.matmul %56, %54, %cst_32 {dimension_numbers = #tpu.dot_dimension_numbers<[1], [0], [0], [1], [0, 0, 1, 1], [], []>} : vector<32x128xf32>, vector<128x128xf32>, vector<32x128xf32> -> vector<32x128xf32>
    %c3_33 = arith.constant 3 : index
    %c0_34 = arith.constant 0 : index
    %c0_35 = arith.constant 0 : index
    %58 = vector.load %arg4[%c3_33, %c0_34, %c0_35] : memref<9x1x128xf32, #tpu.memory_space<vmem>>, vector<1x1x128xf32>
    %59 = vector.shape_cast %58 : vector<1x1x128xf32> to vector<1x128xf32>
    %60 = vector.broadcast %59 : vector<1x128xf32> to vector<32x128xf32>
    %61 = arith.mulf %57, %60 : vector<32x128xf32>
    %62 = arith.addf %53, %61 : vector<32x128xf32>
    %c4 = arith.constant 4 : index
    %c0_36 = arith.constant 0 : index
    %c0_37 = arith.constant 0 : index
    %63 = vector.load %arg3[%c4, %c0_36, %c0_37] : memref<9x32x128xf32, #tpu.memory_space<vmem>>, vector<1x32x128xf32>
    %64 = vector.shape_cast %63 : vector<1x32x128xf32> to vector<32x128xf32>
    %cst_38 = arith.constant dense<0.000000e+00> : vector<32x128xf32>
    %65 = tpu.matmul %64, %25, %cst_38 {dimension_numbers = #tpu.dot_dimension_numbers<[1], [0], [0], [1], [0, 0, 1, 1], [], []>} : vector<32x128xf32>, vector<128x128xf32>, vector<32x128xf32> -> vector<32x128xf32>
    %c4_39 = arith.constant 4 : index
    %c0_40 = arith.constant 0 : index
    %c0_41 = arith.constant 0 : index
    %66 = vector.load %arg4[%c4_39, %c0_40, %c0_41] : memref<9x1x128xf32, #tpu.memory_space<vmem>>, vector<1x1x128xf32>
    %67 = vector.shape_cast %66 : vector<1x1x128xf32> to vector<1x128xf32>
    %68 = vector.broadcast %67 : vector<1x128xf32> to vector<32x128xf32>
    %69 = arith.mulf %65, %68 : vector<32x128xf32>
    %70 = arith.addf %62, %69 : vector<32x128xf32>
    %c127_i32 = arith.constant 127 : i32
    %71 = tpu.dynamic_rotate %25 by %c127_i32 dim 1 : vector<128x128xf32>, i32 -> vector<128x128xf32>
    %c5 = arith.constant 5 : index
    %c0_42 = arith.constant 0 : index
    %c0_43 = arith.constant 0 : index
    %72 = vector.load %arg3[%c5, %c0_42, %c0_43] : memref<9x32x128xf32, #tpu.memory_space<vmem>>, vector<1x32x128xf32>
    %73 = vector.shape_cast %72 : vector<1x32x128xf32> to vector<32x128xf32>
    %cst_44 = arith.constant dense<0.000000e+00> : vector<32x128xf32>
    %74 = tpu.matmul %73, %71, %cst_44 {dimension_numbers = #tpu.dot_dimension_numbers<[1], [0], [0], [1], [0, 0, 1, 1], [], []>} : vector<32x128xf32>, vector<128x128xf32>, vector<32x128xf32> -> vector<32x128xf32>
    %c5_45 = arith.constant 5 : index
    %c0_46 = arith.constant 0 : index
    %c0_47 = arith.constant 0 : index
    %75 = vector.load %arg4[%c5_45, %c0_46, %c0_47] : memref<9x1x128xf32, #tpu.memory_space<vmem>>, vector<1x1x128xf32>
    %76 = vector.shape_cast %75 : vector<1x1x128xf32> to vector<1x128xf32>
    %77 = vector.broadcast %76 : vector<1x128xf32> to vector<32x128xf32>
    %78 = arith.mulf %74, %77 : vector<32x128xf32>
    %79 = arith.addf %70, %78 : vector<32x128xf32>
    %c122_i32 = arith.constant 122 : i32
    %80 = tpu.dynamic_rotate %25 by %c122_i32 dim 1 : vector<128x128xf32>, i32 -> vector<128x128xf32>
    %c6 = arith.constant 6 : index
    %c0_48 = arith.constant 0 : index
    %c0_49 = arith.constant 0 : index
    %81 = vector.load %arg3[%c6, %c0_48, %c0_49] : memref<9x32x128xf32, #tpu.memory_space<vmem>>, vector<1x32x128xf32>
    %82 = vector.shape_cast %81 : vector<1x32x128xf32> to vector<32x128xf32>
    %cst_50 = arith.constant dense<0.000000e+00> : vector<32x128xf32>
    %83 = tpu.matmul %82, %80, %cst_50 {dimension_numbers = #tpu.dot_dimension_numbers<[1], [0], [0], [1], [0, 0, 1, 1], [], []>} : vector<32x128xf32>, vector<128x128xf32>, vector<32x128xf32> -> vector<32x128xf32>
    %c6_51 = arith.constant 6 : index
    %c0_52 = arith.constant 0 : index
    %c0_53 = arith.constant 0 : index
    %84 = vector.load %arg4[%c6_51, %c0_52, %c0_53] : memref<9x1x128xf32, #tpu.memory_space<vmem>>, vector<1x1x128xf32>
    %85 = vector.shape_cast %84 : vector<1x1x128xf32> to vector<1x128xf32>
    %86 = vector.broadcast %85 : vector<1x128xf32> to vector<32x128xf32>
    %87 = arith.mulf %83, %86 : vector<32x128xf32>
    %88 = arith.addf %79, %87 : vector<32x128xf32>
    %c121_i32 = arith.constant 121 : i32
    %89 = tpu.dynamic_rotate %25 by %c121_i32 dim 1 : vector<128x128xf32>, i32 -> vector<128x128xf32>
    %c7 = arith.constant 7 : index
    %c0_54 = arith.constant 0 : index
    %c0_55 = arith.constant 0 : index
    %90 = vector.load %arg3[%c7, %c0_54, %c0_55] : memref<9x32x128xf32, #tpu.memory_space<vmem>>, vector<1x32x128xf32>
    %91 = vector.shape_cast %90 : vector<1x32x128xf32> to vector<32x128xf32>
    %cst_56 = arith.constant dense<0.000000e+00> : vector<32x128xf32>
    %92 = tpu.matmul %91, %89, %cst_56 {dimension_numbers = #tpu.dot_dimension_numbers<[1], [0], [0], [1], [0, 0, 1, 1], [], []>} : vector<32x128xf32>, vector<128x128xf32>, vector<32x128xf32> -> vector<32x128xf32>
    %c7_57 = arith.constant 7 : index
    %c0_58 = arith.constant 0 : index
    %c0_59 = arith.constant 0 : index
    %93 = vector.load %arg4[%c7_57, %c0_58, %c0_59] : memref<9x1x128xf32, #tpu.memory_space<vmem>>, vector<1x1x128xf32>
    %94 = vector.shape_cast %93 : vector<1x1x128xf32> to vector<1x128xf32>
    %95 = vector.broadcast %94 : vector<1x128xf32> to vector<32x128xf32>
    %96 = arith.mulf %92, %95 : vector<32x128xf32>
    %97 = arith.addf %88, %96 : vector<32x128xf32>
    %c120_i32 = arith.constant 120 : i32
    %98 = tpu.dynamic_rotate %25 by %c120_i32 dim 1 : vector<128x128xf32>, i32 -> vector<128x128xf32>
    %c8 = arith.constant 8 : index
    %c0_60 = arith.constant 0 : index
    %c0_61 = arith.constant 0 : index
    %99 = vector.load %arg3[%c8, %c0_60, %c0_61] : memref<9x32x128xf32, #tpu.memory_space<vmem>>, vector<1x32x128xf32>
    %100 = vector.shape_cast %99 : vector<1x32x128xf32> to vector<32x128xf32>
    %cst_62 = arith.constant dense<0.000000e+00> : vector<32x128xf32>
    %101 = tpu.matmul %100, %98, %cst_62 {dimension_numbers = #tpu.dot_dimension_numbers<[1], [0], [0], [1], [0, 0, 1, 1], [], []>} : vector<32x128xf32>, vector<128x128xf32>, vector<32x128xf32> -> vector<32x128xf32>
    %c8_63 = arith.constant 8 : index
    %c0_64 = arith.constant 0 : index
    %c0_65 = arith.constant 0 : index
    %102 = vector.load %arg4[%c8_63, %c0_64, %c0_65] : memref<9x1x128xf32, #tpu.memory_space<vmem>>, vector<1x1x128xf32>
    %103 = vector.shape_cast %102 : vector<1x1x128xf32> to vector<1x128xf32>
    %104 = vector.broadcast %103 : vector<1x128xf32> to vector<32x128xf32>
    %105 = arith.mulf %101, %104 : vector<32x128xf32>
    %106 = arith.addf %97, %105 : vector<32x128xf32>
    %c0_66 = arith.constant 0 : index
    %c0_67 = arith.constant 0 : index
    %107 = vector.load %arg5[%c0_66, %c0_67] : memref<32x128xf32, #tpu.memory_space<vmem>>, vector<32x128xf32>
    tpu.vector_store %arg5[%c0_66, %c0_67], %106 {strides = array<i32>} : memref<32x128xf32, #tpu.memory_space<vmem>>, vector<32x128xf32>,
    return
  }
}

</mosaic_0001>

<llo_original>
// kernel: bn_relu_conv.1
$region0: #{bn_relu_conv.1}
  #allocation0 [shape = 'u32[]', space=smem, size = 0x4, offset = 0x4, fixed_abs, tag = 'smem constant byte address 0x4 - core index']
  #allocation1 [shape = 'u32[72,128]{1,0:T(1,128)}', space=vmem, size = 0x9000, scoped, tag = 'internal scratch']
  %s0 = inlined_call_operand.vmem [shape: f32[128,128], index: 0, kind: input, shape index: {}]
  %s1 = inlined_call_operand.vmem [shape: f32[128,1], index: 1, kind: input, shape index: {}]
  %s2 = inlined_call_operand.vmem [shape: f32[128,1], index: 2, kind: input, shape index: {}]
  %s3 = inlined_call_operand.vmem [shape: f32[9,32,128], index: 3, kind: input, shape index: {}]
  %s4 = inlined_call_operand.vmem [shape: f32[9,1,128], index: 4, kind: input, shape index: {}]
  %s5 = inlined_call_operand.vmem [shape: f32[32,128], index: 5, kind: output, shape index: {}]
  %s6 = sld [smem:[#allocation0]]
  $region30: #{bn_relu_conv.1} parent=0
    _
  %s8 = ssub.s32 1, %s6
  %s9 = scalar_select 0, %s8, %s6
  // Predicated region
  $region2: #{bn_relu_conv.1} parent=0 // pred_check
    _
  $region3: #{bn_relu_conv.1} parent=0 // pred_check_branch
    %11 = sbr.rel (0) target = $region5
  $region4: #{bn_relu_conv.1} parent=0 // pred_region
    _
  $region5: #{bn_relu_conv.1} parent=0 // pred_fallthru
    _
  // Predicated region
  $region6: #{bn_relu_conv.1} parent=0 // pred_check
    _
  $region7: #{bn_relu_conv.1} parent=0 // pred_check_branch
    %13 = sbr.rel (0) target = $region9
  $region8: #{bn_relu_conv.1} parent=0 // pred_region
    _
  $region9: #{bn_relu_conv.1} parent=0 // pred_fallthru
    _
  // Predicated region
  $region10: #{bn_relu_conv.1} parent=0 // pred_check
    _
  $region11: #{bn_relu_conv.1} parent=0 // pred_check_branch
    %15 = sbr.rel (0) target = $region13
  $region12: #{bn_relu_conv.1} parent=0 // pred_region
    _
  $region13: #{bn_relu_conv.1} parent=0 // pred_fallthru
    _
  // Predicated region
  $region14: #{bn_relu_conv.1} parent=0 // pred_check
    _
  $region15: #{bn_relu_conv.1} parent=0 // pred_check_branch
    %17 = sbr.rel (0) target = $region17
  $region16: #{bn_relu_conv.1} parent=0 // pred_region
    _
  $region17: #{bn_relu_conv.1} parent=0 // pred_fallthru
    _
  // Predicated region
  $region18: #{bn_relu_conv.1} parent=0 // pred_check
    _
  $region19: #{bn_relu_conv.1} parent=0 // pred_check_branch
    %19 = sbr.rel (0) target = $region21
  $region20: #{bn_relu_conv.1} parent=0 // pred_region
    _
  $region21: #{bn_relu_conv.1} parent=0 // pred_fallthru
    _
  %v20 = vld [vmem:[%s0] sm:$0xff]
  %v21 = vld [vmem:[%s0 + $0x8] sm:$0xff]
  %v22 = vld [vmem:[%s0 + $0x10] sm:$0xff]
  %v23 = vld [vmem:[%s0 + $0x18] sm:$0xff]
  %v24 = vld [vmem:[%s0 + $0x20] sm:$0xff]
  %v25 = vld [vmem:[%s0 + $0x28] sm:$0xff]
  %v26 = vld [vmem:[%s0 + $0x30] sm:$0xff]
  %v27 = vld [vmem:[%s0 + $0x38] sm:$0xff]
  %v28 = vld [vmem:[%s0 + $0x40] sm:$0xff]
  %v29 = vld [vmem:[%s0 + $0x48] sm:$0xff]
  %v30 = vld [vmem:[%s0 + $0x50] sm:$0xff]
  %v31 = vld [vmem:[%s0 + $0x58] sm:$0xff]
  %v32 = vld [vmem:[%s0 + $0x60] sm:$0xff]
  %v33 = vld [vmem:[%s0 + $0x68] sm:$0xff]
  %v34 = vld [vmem:[%s0 + $0x70] sm:$0xff]
  %v35 = vld [vmem:[%s0 + $0x78] sm:$0xff]
  %36 = vadd.xlane.f32.xlu0 %v20
  %v37 = vpop.xlane.xlu0 %36
  %38 = vadd.xlane.f32.xlu0 %v21
  %v39 = vpop.xlane.xlu0 %38
  %40 = vadd.xlane.f32.xlu0 %v22
  %v41 = vpop.xlane.xlu0 %40
  %42 = vadd.xlane.f32.xlu0 %v23
  %v43 = vpop.xlane.xlu0 %42
  %44 = vadd.xlane.f32.xlu0 %v24
  %v45 = vpop.xlane.xlu0 %44
  %46 = vadd.xlane.f32.xlu0 %v25
  %v47 = vpop.xlane.xlu0 %46
  %48 = vadd.xlane.f32.xlu0 %v26
  %v49 = vpop.xlane.xlu0 %48
  %50 = vadd.xlane.f32.xlu0 %v27
  %v51 = vpop.xlane.xlu0 %50
  %52 = vadd.xlane.f32.xlu0 %v28
  %v53 = vpop.xlane.xlu0 %52
  %54 = vadd.xlane.f32.xlu0 %v29
  %v55 = vpop.xlane.xlu0 %54
  %56 = vadd.xlane.f32.xlu0 %v30
  %v57 = vpop.xlane.xlu0 %56
  %58 = vadd.xlane.f32.xlu0 %v31
  %v59 = vpop.xlane.xlu0 %58
  %60 = vadd.xlane.f32.xlu0 %v32
  %v61 = vpop.xlane.xlu0 %60
  %62 = vadd.xlane.f32.xlu0 %v33
  %v63 = vpop.xlane.xlu0 %62
  %64 = vadd.xlane.f32.xlu0 %v34
  %v65 = vpop.xlane.xlu0 %64
  %66 = vadd.xlane.f32.xlu0 %v35
  %v67 = vpop.xlane.xlu0 %66
  %v68 = vmul.f32 %v37, 0.020408163
  %v69 = vmul.f32 %v39, 0.020408163
  %v70 = vmul.f32 %v41, 0.020408163
  %v71 = vmul.f32 %v43, 0.020408163
  %v72 = vmul.f32 %v45, 0.020408163
  %v73 = vmul.f32 %v47, 0.020408163
  %v74 = vmul.f32 %v49, 0.020408163
  %v75 = vmul.f32 %v51, 0.020408163
  %v76 = vmul.f32 %v53, 0.020408163
  %v77 = vmul.f32 %v55, 0.020408163
  %v78 = vmul.f32 %v57, 0.020408163
  %v79 = vmul.f32 %v59, 0.020408163
  %v80 = vmul.f32 %v61, 0.020408163
  %v81 = vmul.f32 %v63, 0.020408163
  %v82 = vmul.f32 %v65, 0.020408163
  %v83 = vmul.f32 %v67, 0.020408163
  %v84 = vmul.f32 %v20, %v20
  %v85 = vmul.f32 %v21, %v21
  %v86 = vmul.f32 %v22, %v22
  %v87 = vmul.f32 %v23, %v23
  %v88 = vmul.f32 %v24, %v24
  %v89 = vmul.f32 %v25, %v25
  %v90 = vmul.f32 %v26, %v26
  %v91 = vmul.f32 %v27, %v27
  %v92 = vmul.f32 %v28, %v28
  %v93 = vmul.f32 %v29, %v29
  %v94 = vmul.f32 %v30, %v30
  %v95 = vmul.f32 %v31, %v31
  %v96 = vmul.f32 %v32, %v32
  %v97 = vmul.f32 %v33, %v33
  %v98 = vmul.f32 %v34, %v34
  %v99 = vmul.f32 %v35, %v35
  %100 = vadd.xlane.f32.xlu0 %v84
  %v101 = vpop.xlane.xlu0 %100
  %102 = vadd.xlane.f32.xlu0 %v85
  %v103 = vpop.xlane.xlu0 %102
  %104 = vadd.xlane.f32.xlu0 %v86
  %v105 = vpop.xlane.xlu0 %104
  %106 = vadd.xlane.f32.xlu0 %v87
  %v107 = vpop.xlane.xlu0 %106
  %108 = vadd.xlane.f32.xlu0 %v88
  %v109 = vpop.xlane.xlu0 %108
  %110 = vadd.xlane.f32.xlu0 %v89
  %v111 = vpop.xlane.xlu0 %110
  %112 = vadd.xlane.f32.xlu0 %v90
  %v113 = vpop.xlane.xlu0 %112
  %114 = vadd.xlane.f32.xlu0 %v91
  %v115 = vpop.xlane.xlu0 %114
  %116 = vadd.xlane.f32.xlu0 %v92
  %v117 = vpop.xlane.xlu0 %116
  %118 = vadd.xlane.f32.xlu0 %v93
  %v119 = vpop.xlane.xlu0 %118
  %120 = vadd.xlane.f32.xlu0 %v94
  %v121 = vpop.xlane.xlu0 %120
  %122 = vadd.xlane.f32.xlu0 %v95
  %v123 = vpop.xlane.xlu0 %122
  %124 = vadd.xlane.f32.xlu0 %v96
  %v125 = vpop.xlane.xlu0 %124
  %126 = vadd.xlane.f32.xlu0 %v97
  %v127 = vpop.xlane.xlu0 %126
  %128 = vadd.xlane.f32.xlu0 %v98
  %v129 = vpop.xlane.xlu0 %128
  %130 = vadd.xlane.f32.xlu0 %v99
  %v131 = vpop.xlane.xlu0 %130
  %v132 = vmul.f32 %v101, 0.020408163
  %v133 = vmul.f32 %v103, 0.020408163
  %v134 = vmul.f32 %v105, 0.020408163
  %v135 = vmul.f32 %v107, 0.020408163
  %v136 = vmul.f32 %v109, 0.020408163
  %v137 = vmul.f32 %v111, 0.020408163
  %v138 = vmul.f32 %v113, 0.020408163
  %v139 = vmul.f32 %v115, 0.020408163
  %v140 = vmul.f32 %v117, 0.020408163
  %v141 = vmul.f32 %v119, 0.020408163
  %v142 = vmul.f32 %v121, 0.020408163
  %v143 = vmul.f32 %v123, 0.020408163
  %v144 = vmul.f32 %v125, 0.020408163
  %v145 = vmul.f32 %v127, 0.020408163
  %v146 = vmul.f32 %v129, 0.020408163
  %v147 = vmul.f32 %v131, 0.020408163
  %v148 = vmul.f32 %v68, %v68
  %v149 = vmul.f32 %v69, %v69
  %v150 = vmul.f32 %v70, %v70
  %v151 = vmul.f32 %v71, %v71
  %v152 = vmul.f32 %v72, %v72
  %v153 = vmul.f32 %v73, %v73
  %v154 = vmul.f32 %v74, %v74
  %v155 = vmul.f32 %v75, %v75
  %v156 = vmul.f32 %v76, %v76
  %v157 = vmul.f32 %v77, %v77
  %v158 = vmul.f32 %v78, %v78
  %v159 = vmul.f32 %v79, %v79
  %v160 = vmul.f32 %v80, %v80
  %v161 = vmul.f32 %v81, %v81
  %v162 = vmul.f32 %v82, %v82
  %v163 = vmul.f32 %v83, %v83
  %v164 = vsub.f32 %v132, %v148
  %v165 = vsub.f32 %v133, %v149
  %v166 = vsub.f32 %v134, %v150
  %v167 = vsub.f32 %v135, %v151
  %v168 = vsub.f32 %v136, %v152
  %v169 = vsub.f32 %v137, %v153
  %v170 = vsub.f32 %v138, %v154
  %v171 = vsub.f32 %v139, %v155
  %v172 = vsub.f32 %v140, %v156
  %v173 = vsub.f32 %v141, %v157
  %v174 = vsub.f32 %v142, %v158
  %v175 = vsub.f32 %v143, %v159
  %v176 = vsub.f32 %v144, %v160
  %v177 = vsub.f32 %v145, %v161
  %v178 = vsub.f32 %v146, %v162
  %v179 = vsub.f32 %v147, %v163
  %v180 = vld [vmem:[%s1] sm:$0xff]
  %v181 = vld [vmem:[%s1 + $0x8] sm:$0xff]
  %v182 = vld [vmem:[%s1 + $0x10] sm:$0xff]
  %v183 = vld [vmem:[%s1 + $0x18] sm:$0xff]
  %v184 = vld [vmem:[%s1 + $0x20] sm:$0xff]
  %v185 = vld [vmem:[%s1 + $0x28] sm:$0xff]
  %v186 = vld [vmem:[%s1 + $0x30] sm:$0xff]
  %v187 = vld [vmem:[%s1 + $0x38] sm:$0xff]
  %v188 = vld [vmem:[%s1 + $0x40] sm:$0xff]
  %v189 = vld [vmem:[%s1 + $0x48] sm:$0xff]
  %v190 = vld [vmem:[%s1 + $0x50] sm:$0xff]
  %v191 = vld [vmem:[%s1 + $0x58] sm:$0xff]
  %v192 = vld [vmem:[%s1 + $0x60] sm:$0xff]
  %v193 = vld [vmem:[%s1 + $0x68] sm:$0xff]
  %v194 = vld [vmem:[%s1 + $0x70] sm:$0xff]
  %v195 = vld [vmem:[%s1 + $0x78] sm:$0xff]
  %v196 = vadd.f32 %v164, 1e-05
  %v197 = vadd.f32 %v165, 1e-05
  %v198 = vadd.f32 %v166, 1e-05
  %v199 = vadd.f32 %v167, 1e-05
  %v200 = vadd.f32 %v168, 1e-05
  %v201 = vadd.f32 %v169, 1e-05
  %v202 = vadd.f32 %v170, 1e-05
  %v203 = vadd.f32 %v171, 1e-05
  %v204 = vadd.f32 %v172, 1e-05
  %v205 = vadd.f32 %v173, 1e-05
  %v206 = vadd.f32 %v174, 1e-05
  %v207 = vadd.f32 %v175, 1e-05
  %v208 = vadd.f32 %v176, 1e-05
  %v209 = vadd.f32 %v177, 1e-05
  %v210 = vadd.f32 %v178, 1e-05
  %v211 = vadd.f32 %v179, 1e-05
  %v212 = vrsqrt.pop %v196
  %v213 = vmul.f32 %v212, %v196
  %v214 = vmul.f32 %v213, %v212
  %v215 = vmul.f32 0.5, %v214
  %v216 = vsub.f32 1.5, %v215
  %v217 = vmul.f32 %v212, %v216
  %vm218 = vweird.f32 %v196
  %vm219 = vweird.f32 %v212
  %vm220 = vmor %vm218, %vm219
  %v221 = vsel %vm220, %v212, %v217
  %v222 = vrsqrt.pop %v197
  %v223 = vmul.f32 %v222, %v197
  %v224 = vmul.f32 %v223, %v222
  %v225 = vmul.f32 0.5, %v224
  %v226 = vsub.f32 1.5, %v225
  %v227 = vmul.f32 %v222, %v226
  %vm228 = vweird.f32 %v197
  %vm229 = vweird.f32 %v222
  %vm230 = vmor %vm228, %vm229
  %v231 = vsel %vm230, %v222, %v227
  %v232 = vrsqrt.pop %v198
  %v233 = vmul.f32 %v232, %v198
  %v234 = vmul.f32 %v233, %v232
  %v235 = vmul.f32 0.5, %v234
  %v236 = vsub.f32 1.5, %v235
  %v237 = vmul.f32 %v232, %v236
  %vm238 = vweird.f32 %v198
  %vm239 = vweird.f32 %v232
  %vm240 = vmor %vm238, %vm239
  %v241 = vsel %vm240, %v232, %v237
  %v242 = vrsqrt.pop %v199
  %v243 = vmul.f32 %v242, %v199
  %v244 = vmul.f32 %v243, %v242
  %v245 = vmul.f32 0.5, %v244
  %v246 = vsub.f32 1.5, %v245
  %v247 = vmul.f32 %v242, %v246
  %vm248 = vweird.f32 %v199
  %vm249 = vweird.f32 %v242
  %vm250 = vmor %vm248, %vm249
  %v251 = vsel %vm250, %v242, %v247
  %v252 = vrsqrt.pop %v200
  %v253 = vmul.f32 %v252, %v200
  %v254 = vmul.f32 %v253, %v252
  %v255 = vmul.f32 0.5, %v254
  %v256 = vsub.f32 1.5, %v255
  %v257 = vmul.f32 %v252, %v256
  %vm258 = vweird.f32 %v200
  %vm259 = vweird.f32 %v252
  %vm260 = vmor %vm258, %vm259
  %v261 = vsel %vm260, %v252, %v257
  %v262 = vrsqrt.pop %v201
  %v263 = vmul.f32 %v262, %v201
  %v264 = vmul.f32 %v263, %v262
  %v265 = vmul.f32 0.5, %v264
  %v266 = vsub.f32 1.5, %v265
  %v267 = vmul.f32 %v262, %v266
  %vm268 = vweird.f32 %v201
  %vm269 = vweird.f32 %v262
  %vm270 = vmor %vm268, %vm269
  %v271 = vsel %vm270, %v262, %v267
  %v272 = vrsqrt.pop %v202
  %v273 = vmul.f32 %v272, %v202
  %v274 = vmul.f32 %v273, %v272
  %v275 = vmul.f32 0.5, %v274
  %v276 = vsub.f32 1.5, %v275
  %v277 = vmul.f32 %v272, %v276
  %vm278 = vweird.f32 %v202
  %vm279 = vweird.f32 %v272
  %vm280 = vmor %vm278, %vm279
  %v281 = vsel %vm280, %v272, %v277
  %v282 = vrsqrt.pop %v203
  %v283 = vmul.f32 %v282, %v203
  %v284 = vmul.f32 %v283, %v282
  %v285 = vmul.f32 0.5, %v284
  %v286 = vsub.f32 1.5, %v285
  %v287 = vmul.f32 %v282, %v286
  %vm288 = vweird.f32 %v203
  %vm289 = vweird.f32 %v282
  %vm290 = vmor %vm288, %vm289
  %v291 = vsel %vm290, %v282, %v287
  %v292 = vrsqrt.pop %v204
  %v293 = vmul.f32 %v292, %v204
  %v294 = vmul.f32 %v293, %v292
  %v295 = vmul.f32 0.5, %v294
  %v296 = vsub.f32 1.5, %v295
  %v297 = vmul.f32 %v292, %v296
  %vm298 = vweird.f32 %v204
  %vm299 = vweird.f32 %v292
  %vm300 = vmor %vm298, %vm299
  %v301 = vsel %vm300, %v292, %v297
  %v302 = vrsqrt.pop %v205
  %v303 = vmul.f32 %v302, %v205
  %v304 = vmul.f32 %v303, %v302
  %v305 = vmul.f32 0.5, %v304
  %v306 = vsub.f32 1.5, %v305
  %v307 = vmul.f32 %v302, %v306
  %vm308 = vweird.f32 %v205
  %vm309 = vweird.f32 %v302
  %vm310 = vmor %vm308, %vm309
  %v311 = vsel %vm310, %v302, %v307
  %v312 = vrsqrt.pop %v206
  %v313 = vmul.f32 %v312, %v206
  %v314 = vmul.f32 %v313, %v312
  %v315 = vmul.f32 0.5, %v314
  %v316 = vsub.f32 1.5, %v315
  %v317 = vmul.f32 %v312, %v316
  %vm318 = vweird.f32 %v206
  %vm319 = vweird.f32 %v312
  %vm320 = vmor %vm318, %vm319
  %v321 = vsel %vm320, %v312, %v317
  %v322 = vrsqrt.pop %v207
  %v323 = vmul.f32 %v322, %v207
  %v324 = vmul.f32 %v323, %v322
  %v325 = vmul.f32 0.5, %v324
  %v326 = vsub.f32 1.5, %v325
  %v327 = vmul.f32 %v322, %v326
  %vm328 = vweird.f32 %v207
  %vm329 = vweird.f32 %v322
  %vm330 = vmor %vm328, %vm329
  %v331 = vsel %vm330, %v322, %v327
  %v332 = vrsqrt.pop %v208
  %v333 = vmul.f32 %v332, %v208
  %v334 = vmul.f32 %v333, %v332
  %v335 = vmul.f32 0.5, %v334
  %v336 = vsub.f32 1.5, %v335
  %v337 = vmul.f32 %v332, %v336
  %vm338 = vweird.f32 %v208
  %vm339 = vweird.f32 %v332
  %vm340 = vmor %vm338, %vm339
  %v341 = vsel %vm340, %v332, %v337
  %v342 = vrsqrt.pop %v209
  %v343 = vmul.f32 %v342, %v209
  %v344 = vmul.f32 %v343, %v342
  %v345 = vmul.f32 0.5, %v344
  %v346 = vsub.f32 1.5, %v345
  %v347 = vmul.f32 %v342, %v346
  %vm348 = vweird.f32 %v209
  %vm349 = vweird.f32 %v342
  %vm350 = vmor %vm348, %vm349
  %v351 = vsel %vm350, %v342, %v347
  %v352 = vrsqrt.pop %v210
  %v353 = vmul.f32 %v352, %v210
  %v354 = vmul.f32 %v353, %v352
  %v355 = vmul.f32 0.5, %v354
  %v356 = vsub.f32 1.5, %v355
  %v357 = vmul.f32 %v352, %v356
  %vm358 = vweird.f32 %v210
  %vm359 = vweird.f32 %v352
  %vm360 = vmor %vm358, %vm359
  %v361 = vsel %vm360, %v352, %v357
  %v362 = vrsqrt.pop %v211
  %v363 = vmul.f32 %v362, %v211
  %v364 = vmul.f32 %v363, %v362
  %v365 = vmul.f32 0.5, %v364
  %v366 = vsub.f32 1.5, %v365
  %v367 = vmul.f32 %v362, %v366
  %vm368 = vweird.f32 %v211
  %vm369 = vweird.f32 %v362
  %vm370 = vmor %vm368, %vm369
  %v371 = vsel %vm370, %v362, %v367
  %v372 = vmul.f32 %v180, %v221
  %v373 = vmul.f32 %v181, %v231
  %v374 = vmul.f32 %v182, %v241
  %v375 = vmul.f32 %v183, %v251
  %v376 = vmul.f32 %v184, %v261
  %v377 = vmul.f32 %v185, %v271
  %v378 = vmul.f32 %v186, %v281
  %v379 = vmul.f32 %v187, %v291
  %v380 = vmul.f32 %v188, %v301
  %v381 = vmul.f32 %v189, %v311
  %v382 = vmul.f32 %v190, %v321
  %v383 = vmul.f32 %v191, %v331
  %v384 = vmul.f32 %v192, %v341
  %v385 = vmul.f32 %v193, %v351
  %v386 = vmul.f32 %v194, %v361
  %v387 = vmul.f32 %v195, %v371
  %v388 = vld [vmem:[%s2] sm:$0xff]
  %v389 = vld [vmem:[%s2 + $0x8] sm:$0xff]
  %v390 = vld [vmem:[%s2 + $0x10] sm:$0xff]
  %v391 = vld [vmem:[%s2 + $0x18] sm:$0xff]
  %v392 = vld [vmem:[%s2 + $0x20] sm:$0xff]
  %v393 = vld [vmem:[%s2 + $0x28] sm:$0xff]
  %v394 = vld [vmem:[%s2 + $0x30] sm:$0xff]
  %v395 = vld [vmem:[%s2 + $0x38] sm:$0xff]
  %v396 = vld [vmem:[%s2 + $0x40] sm:$0xff]
  %v397 = vld [vmem:[%s2 + $0x48] sm:$0xff]
  %v398 = vld [vmem:[%s2 + $0x50] sm:$0xff]
  %v399 = vld [vmem:[%s2 + $0x58] sm:$0xff]
  %v400 = vld [vmem:[%s2 + $0x60] sm:$0xff]
  %v401 = vld [vmem:[%s2 + $0x68] sm:$0xff]
  %v402 = vld [vmem:[%s2 + $0x70] sm:$0xff]
  %v403 = vld [vmem:[%s2 + $0x78] sm:$0xff]
  %v404 = vmul.f32 %v68, %v372
  %v405 = vmul.f32 %v69, %v373
  %v406 = vmul.f32 %v70, %v374
  %v407 = vmul.f32 %v71, %v375
  %v408 = vmul.f32 %v72, %v376
  %v409 = vmul.f32 %v73, %v377
  %v410 = vmul.f32 %v74, %v378
  %v411 = vmul.f32 %v75, %v379
  %v412 = vmul.f32 %v76, %v380
  %v413 = vmul.f32 %v77, %v381
  %v414 = vmul.f32 %v78, %v382
  %v415 = vmul.f32 %v79, %v383
  %v416 = vmul.f32 %v80, %v384
  %v417 = vmul.f32 %v81, %v385
  %v418 = vmul.f32 %v82, %v386
  %v419 = vmul.f32 %v83, %v387
  %v420 = vsub.f32 %v388, %v404
  %v421 = vsub.f32 %v389, %v405
  %v422 = vsub.f32 %v390, %v406
  %v423 = vsub.f32 %v391, %v407
  %v424 = vsub.f32 %v392, %v408
  %v425 = vsub.f32 %v393, %v409
  %v426 = vsub.f32 %v394, %v410
  %v427 = vsub.f32 %v395, %v411
  %v428 = vsub.f32 %v396, %v412
  %v429 = vsub.f32 %v397, %v413
  %v430 = vsub.f32 %v398, %v414
  %v431 = vsub.f32 %v399, %v415
  %v432 = vsub.f32 %v400, %v416
  %v433 = vsub.f32 %v401, %v417
  %v434 = vsub.f32 %v402, %v418
  %v435 = vsub.f32 %v403, %v419
  %437 = vset.pattern.permute.xlu0 0
  %438 = vperm.xlu0 %437, %v372
  %v439 = vpop.permute.xlu0 %438
  %442 = vset.pattern.permute.xlu0 0
  %443 = vperm.xlu0 %442, %v373
  %v444 = vpop.permute.xlu0 %443
  %447 = vset.pattern.permute.xlu0 0
  %448 = vperm.xlu0 %447, %v374
  %v449 = vpop.permute.xlu0 %448
  %452 = vset.pattern.permute.xlu0 0
  %453 = vperm.xlu0 %452, %v375
  %v454 = vpop.permute.xlu0 %453
  %457 = vset.pattern.permute.xlu0 0
  %458 = vperm.xlu0 %457, %v376
  %v459 = vpop.permute.xlu0 %458
  %462 = vset.pattern.permute.xlu0 0
  %463 = vperm.xlu0 %462, %v377
  %v464 = vpop.permute.xlu0 %463
  %467 = vset.pattern.permute.xlu0 0
  %468 = vperm.xlu0 %467, %v378
  %v469 = vpop.permute.xlu0 %468
  %472 = vset.pattern.permute.xlu0 0
  %473 = vperm.xlu0 %472, %v379
  %v474 = vpop.permute.xlu0 %473
  %477 = vset.pattern.permute.xlu0 0
  %478 = vperm.xlu0 %477, %v380
  %v479 = vpop.permute.xlu0 %478
  %482 = vset.pattern.permute.xlu0 0
  %483 = vperm.xlu0 %482, %v381
  %v484 = vpop.permute.xlu0 %483
  %487 = vset.pattern.permute.xlu0 0
  %488 = vperm.xlu0 %487, %v382
  %v489 = vpop.permute.xlu0 %488
  %492 = vset.pattern.permute.xlu0 0
  %493 = vperm.xlu0 %492, %v383
  %v494 = vpop.permute.xlu0 %493
  %497 = vset.pattern.permute.xlu0 0
  %498 = vperm.xlu0 %497, %v384
  %v499 = vpop.permute.xlu0 %498
  %502 = vset.pattern.permute.xlu0 0
  %503 = vperm.xlu0 %502, %v385
  %v504 = vpop.permute.xlu0 %503
  %507 = vset.pattern.permute.xlu0 0
  %508 = vperm.xlu0 %507, %v386
  %v509 = vpop.permute.xlu0 %508
  %512 = vset.pattern.permute.xlu0 0
  %513 = vperm.xlu0 %512, %v387
  %v514 = vpop.permute.xlu0 %513
  %v516 = vmul.f32 %v20, %v439
  %v517 = vmul.f32 %v21, %v444
  %v518 = vmul.f32 %v22, %v449
  %v519 = vmul.f32 %v23, %v454
  %v520 = vmul.f32 %v24, %v459
  %v521 = vmul.f32 %v25, %v464
  %v522 = vmul.f32 %v26, %v469
  %v523 = vmul.f32 %v27, %v474
  %v524 = vmul.f32 %v28, %v479
  %v525 = vmul.f32 %v29, %v484
  %v526 = vmul.f32 %v30, %v489
  %v527 = vmul.f32 %v31, %v494
  %v528 = vmul.f32 %v32, %v499
  %v529 = vmul.f32 %v33, %v504
  %v530 = vmul.f32 %v34, %v509
  %v531 = vmul.f32 %v35, %v514
  %533 = vset.pattern.permute.xlu0 0
  %534 = vperm.xlu0 %533, %v420
  %v535 = vpop.permute.xlu0 %534
  %538 = vset.pattern.permute.xlu0 0
  %539 = vperm.xlu0 %538, %v421
  %v540 = vpop.permute.xlu0 %539
  %543 = vset.pattern.permute.xlu0 0
  %544 = vperm.xlu0 %543, %v422
  %v545 = vpop.permute.xlu0 %544
  %548 = vset.pattern.permute.xlu0 0
  %549 = vperm.xlu0 %548, %v423
  %v550 = vpop.permute.xlu0 %549
  %553 = vset.pattern.permute.xlu0 0
  %554 = vperm.xlu0 %553, %v424
  %v555 = vpop.permute.xlu0 %554
  %558 = vset.pattern.permute.xlu0 0
  %559 = vperm.xlu0 %558, %v425
  %v560 = vpop.permute.xlu0 %559
  %563 = vset.pattern.permute.xlu0 0
  %564 = vperm.xlu0 %563, %v426
  %v565 = vpop.permute.xlu0 %564
  %568 = vset.pattern.permute.xlu0 0
  %569 = vperm.xlu0 %568, %v427
  %v570 = vpop.permute.xlu0 %569
  %573 = vset.pattern.permute.xlu0 0
  %574 = vperm.xlu0 %573, %v428
  %v575 = vpop.permute.xlu0 %574
  %578 = vset.pattern.permute.xlu0 0
  %579 = vperm.xlu0 %578, %v429
  %v580 = vpop.permute.xlu0 %579
  %583 = vset.pattern.permute.xlu0 0
  %584 = vperm.xlu0 %583, %v430
  %v585 = vpop.permute.xlu0 %584
  %588 = vset.pattern.permute.xlu0 0
  %589 = vperm.xlu0 %588, %v431
  %v590 = vpop.permute.xlu0 %589
  %593 = vset.pattern.permute.xlu0 0
  %594 = vperm.xlu0 %593, %v432
  %v595 = vpop.permute.xlu0 %594
  %598 = vset.pattern.permute.xlu0 0
  %599 = vperm.xlu0 %598, %v433
  %v600 = vpop.permute.xlu0 %599
  %603 = vset.pattern.permute.xlu0 0
  %604 = vperm.xlu0 %603, %v434
  %v605 = vpop.permute.xlu0 %604
  %608 = vset.pattern.permute.xlu0 0
  %609 = vperm.xlu0 %608, %v435
  %v610 = vpop.permute.xlu0 %609
  %v612 = vadd.f32 %v516, %v535
  %v613 = vadd.f32 %v517, %v540
  %v614 = vadd.f32 %v518, %v545
  %v615 = vadd.f32 %v519, %v550
  %v616 = vadd.f32 %v520, %v555
  %v617 = vadd.f32 %v521, %v560
  %v618 = vadd.f32 %v522, %v565
  %v619 = vadd.f32 %v523, %v570
  %v620 = vadd.f32 %v524, %v575
  %v621 = vadd.f32 %v525, %v580
  %v622 = vadd.f32 %v526, %v585
  %v623 = vadd.f32 %v527, %v590
  %v624 = vadd.f32 %v528, %v595
  %v625 = vadd.f32 %v529, %v600
  %v626 = vadd.f32 %v530, %v605
  %v627 = vadd.f32 %v531, %v610
  %v628 = vmax.f32 %v612, 0.0
  %v629 = vmax.f32 %v613, 0.0
  %v630 = vmax.f32 %v614, 0.0
  %v631 = vmax.f32 %v615, 0.0
  %v632 = vmax.f32 %v616, 0.0
  %v633 = vmax.f32 %v617, 0.0
  %v634 = vmax.f32 %v618, 0.0
  %v635 = vmax.f32 %v619, 0.0
  %v636 = vmax.f32 %v620, 0.0
  %v637 = vmax.f32 %v621, 0.0
  %v638 = vmax.f32 %v622, 0.0
  %v639 = vmax.f32 %v623, 0.0
  %v640 = vmax.f32 %v624, 0.0
  %v641 = vmax.f32 %v625, 0.0
  %v642 = vmax.f32 %v626, 0.0
  %v643 = vmax.f32 %v627, 0.0
  %644 = vrot.lane.b32.xlu0 %v628, 8
  %v645 = vpop.permute.xlu0 %644
  %646 = vrot.lane.b32.xlu0 %v629, 8
  %v647 = vpop.permute.xlu0 %646
  %648 = vrot.lane.b32.xlu0 %v630, 8
  %v649 = vpop.permute.xlu0 %648
  %650 = vrot.lane.b32.xlu0 %v631, 8
  %v651 = vpop.permute.xlu0 %650
  %652 = vrot.lane.b32.xlu0 %v632, 8
  %v653 = vpop.permute.xlu0 %652
  %654 = vrot.lane.b32.xlu0 %v633, 8
  %v655 = vpop.permute.xlu0 %654
  %656 = vrot.lane.b32.xlu0 %v634, 8
  %v657 = vpop.permute.xlu0 %656
  %658 = vrot.lane.b32.xlu0 %v635, 8
  %v659 = vpop.permute.xlu0 %658
  %660 = vrot.lane.b32.xlu0 %v636, 8
  %v661 = vpop.permute.xlu0 %660
  %662 = vrot.lane.b32.xlu0 %v637, 8
  %v663 = vpop.permute.xlu0 %662
  %664 = vrot.lane.b32.xlu0 %v638, 8
  %v665 = vpop.permute.xlu0 %664
  %666 = vrot.lane.b32.xlu0 %v639, 8
  %v667 = vpop.permute.xlu0 %666
  %668 = vrot.lane.b32.xlu0 %v640, 8
  %v669 = vpop.permute.xlu0 %668
  %670 = vrot.lane.b32.xlu0 %v641, 8
  %v671 = vpop.permute.xlu0 %670
  %672 = vrot.lane.b32.xlu0 %v642, 8
  %v673 = vpop.permute.xlu0 %672
  %674 = vrot.lane.b32.xlu0 %v643, 8
  %v675 = vpop.permute.xlu0 %674
  %v676 = vld [vmem:[%s3] sm:$0xff]
  %v677 = vld [vmem:[%s3 + $0x8] sm:$0xff]
  %v678 = vld [vmem:[%s3 + $0x10] sm:$0xff]
  %v679 = vld [vmem:[%s3 + $0x18] sm:$0xff]
  %680 = vmatpush.msra.mxu0 %v675
  %681 = vmatpush.msra.mxu0 %v673
  %682 = vmatpush.msra.mxu0 %v671
  %683 = vmatpush.msra.mxu0 %v669
  %684 = vmatpush.msra.mxu0 %v667
  %685 = vmatpush.msra.mxu0 %v665
  %686 = vmatpush.msra.mxu0 %v663
  %687 = vmatpush.msra.mxu0 %v661
  %688 = vmatpush.msra.mxu0 %v659
  %689 = vmatpush.msra.mxu0 %v657
  %690 = vmatpush.msra.mxu0 %v655
  %691 = vmatpush.msra.mxu0 %v653
  %692 = vmatpush.msra.mxu0 %v651
  %693 = vmatpush.msra.mxu0 %v649
  %694 = vmatpush.msra.mxu0 %v647
  %695 = vmatpush.msra.mxu0 %v645
  %696 = vmatmul.f32.gmra.mxu0 %v676
  %v697 = vpop.f32.mrf.mxu0
  %v698 = vadd.f32 0.0, %v697
  %699 = vmatmul.f32.gmra.mxu0 %v677
  %v700 = vpop.f32.mrf.mxu0
  %v701 = vadd.f32 0.0, %v700
  %702 = vmatmul.f32.gmra.mxu0 %v678
  %v703 = vpop.f32.mrf.mxu0
  %v704 = vadd.f32 0.0, %v703
  %705 = vmatmul.f32.gmra.mxu0 %v679
  %v706 = vpop.f32.mrf.mxu0
  %v707 = vadd.f32 0.0, %v706
  %708 = vdwg.mxu0
  %v709 = vld [vmem:[%s4] sm:$0x1]
  %v711 = vperm.slane %v709, 0
  %v713 = vmul.f32 %v698, %v711
  %v714 = vmul.f32 %v701, %v711
  %v715 = vmul.f32 %v704, %v711
  %v716 = vmul.f32 %v707, %v711
  %v717 = vadd.f32 %v713, 0.0
  %v718 = vadd.f32 %v714, 0.0
  %v719 = vadd.f32 %v715, 0.0
  %v720 = vadd.f32 %v716, 0.0
  %721 = vrot.lane.b32.xlu0 %v628, 7
  %v722 = vpop.permute.xlu0 %721
  %723 = vrot.lane.b32.xlu0 %v629, 7
  %v724 = vpop.permute.xlu0 %723
  %725 = vrot.lane.b32.xlu0 %v630, 7
  %v726 = vpop.permute.xlu0 %725
  %727 = vrot.lane.b32.xlu0 %v631, 7
  %v728 = vpop.permute.xlu0 %727
  %729 = vrot.lane.b32.xlu0 %v632, 7
  %v730 = vpop.permute.xlu0 %729
  %731 = vrot.lane.b32.xlu0 %v633, 7
  %v732 = vpop.permute.xlu0 %731
  %733 = vrot.lane.b32.xlu0 %v634, 7
  %v734 = vpop.permute.xlu0 %733
  %735 = vrot.lane.b32.xlu0 %v635, 7
  %v736 = vpop.permute.xlu0 %735
  %737 = vrot.lane.b32.xlu0 %v636, 7
  %v738 = vpop.permute.xlu0 %737
  %739 = vrot.lane.b32.xlu0 %v637, 7
  %v740 = vpop.permute.xlu0 %739
  %741 = vrot.lane.b32.xlu0 %v638, 7
  %v742 = vpop.permute.xlu0 %741
  %743 = vrot.lane.b32.xlu0 %v639, 7
  %v744 = vpop.permute.xlu0 %743
  %745 = vrot.lane.b32.xlu0 %v640, 7
  %v746 = vpop.permute.xlu0 %745
  %747 = vrot.lane.b32.xlu0 %v641, 7
  %v748 = vpop.permute.xlu0 %747
  %749 = vrot.lane.b32.xlu0 %v642, 7
  %v750 = vpop.permute.xlu0 %749
  %751 = vrot.lane.b32.xlu0 %v643, 7
  %v752 = vpop.permute.xlu0 %751
  %s753 = scalar_lea.vmem %s3, 32
  %v754 = vld [vmem:[%s753] sm:$0xff]
  %v755 = vld [vmem:[%s753 + $0x8] sm:$0xff]
  %v756 = vld [vmem:[%s753 + $0x10] sm:$0xff]
  %v757 = vld [vmem:[%s753 + $0x18] sm:$0xff]
  %758 = vmatpush.msra.mxu0 %v752
  %759 = vmatpush.msra.mxu0 %v750
  %760 = vmatpush.msra.mxu0 %v748
  %761 = vmatpush.msra.mxu0 %v746
  %762 = vmatpush.msra.mxu0 %v744
  %763 = vmatpush.msra.mxu0 %v742
  %764 = vmatpush.msra.mxu0 %v740
  %765 = vmatpush.msra.mxu0 %v738
  %766 = vmatpush.msra.mxu0 %v736
  %767 = vmatpush.msra.mxu0 %v734
  %768 = vmatpush.msra.mxu0 %v732
  %769 = vmatpush.msra.mxu0 %v730
  %770 = vmatpush.msra.mxu0 %v728
  %771 = vmatpush.msra.mxu0 %v726
  %772 = vmatpush.msra.mxu0 %v724
  %773 = vmatpush.msra.mxu0 %v722
  %774 = vmatmul.f32.gmra.mxu0 %v754
  %v775 = vpop.f32.mrf.mxu0
  %v776 = vadd.f32 0.0, %v775
  %777 = vmatmul.f32.gmra.mxu0 %v755
  %v778 = vpop.f32.mrf.mxu0
  %v779 = vadd.f32 0.0, %v778
  %780 = vmatmul.f32.gmra.mxu0 %v756
  %v781 = vpop.f32.mrf.mxu0
  %v782 = vadd.f32 0.0, %v781
  %783 = vmatmul.f32.gmra.mxu0 %v757
  %v784 = vpop.f32.mrf.mxu0
  %v785 = vadd.f32 0.0, %v784
  %786 = vdwg.mxu0
  %s787 = scalar_lea.vmem %s4, 1
  %v788 = vld [vmem:[%s787] sm:$0x1]
  %v790 = vperm.slane %v788, 0
  %v792 = vmul.f32 %v776, %v790
  %v793 = vmul.f32 %v779, %v790
  %v794 = vmul.f32 %v782, %v790
  %v795 = vmul.f32 %v785, %v790
  %v796 = vadd.f32 %v717, %v792
  %v797 = vadd.f32 %v718, %v793
  %v798 = vadd.f32 %v719, %v794
  %v799 = vadd.f32 %v720, %v795
  %800 = vrot.lane.b32.xlu0 %v628, 6
  %v801 = vpop.permute.xlu0 %800
  %802 = vrot.lane.b32.xlu0 %v629, 6
  %v803 = vpop.permute.xlu0 %802
  %804 = vrot.lane.b32.xlu0 %v630, 6
  %v805 = vpop.permute.xlu0 %804
  %806 = vrot.lane.b32.xlu0 %v631, 6
  %v807 = vpop.permute.xlu0 %806
  %808 = vrot.lane.b32.xlu0 %v632, 6
  %v809 = vpop.permute.xlu0 %808
  %810 = vrot.lane.b32.xlu0 %v633, 6
  %v811 = vpop.permute.xlu0 %810
  %812 = vrot.lane.b32.xlu0 %v634, 6
  %v813 = vpop.permute.xlu0 %812
  %814 = vrot.lane.b32.xlu0 %v635, 6
  %v815 = vpop.permute.xlu0 %814
  %816 = vrot.lane.b32.xlu0 %v636, 6
  %v817 = vpop.permute.xlu0 %816
  %818 = vrot.lane.b32.xlu0 %v637, 6
  %v819 = vpop.permute.xlu0 %818
  %820 = vrot.lane.b32.xlu0 %v638, 6
  %v821 = vpop.permute.xlu0 %820
  %822 = vrot.lane.b32.xlu0 %v639, 6
  %v823 = vpop.permute.xlu0 %822
  %824 = vrot.lane.b32.xlu0 %v640, 6
  %v825 = vpop.permute.xlu0 %824
  %826 = vrot.lane.b32.xlu0 %v641, 6
  %v827 = vpop.permute.xlu0 %826
  %828 = vrot.lane.b32.xlu0 %v642, 6
  %v829 = vpop.permute.xlu0 %828
  %830 = vrot.lane.b32.xlu0 %v643, 6
  %v831 = vpop.permute.xlu0 %830
  %s832 = scalar_lea.vmem %s3, 64
  %v833 = vld [vmem:[%s832] sm:$0xff]
  %v834 = vld [vmem:[%s832 + $0x8] sm:$0xff]
  %v835 = vld [vmem:[%s832 + $0x10] sm:$0xff]
  %v836 = vld [vmem:[%s832 + $0x18] sm:$0xff]
  %837 = vmatpush.msra.mxu0 %v831
  %838 = vmatpush.msra.mxu0 %v829
  %839 = vmatpush.msra.mxu0 %v827
  %840 = vmatpush.msra.mxu0 %v825
  %841 = vmatpush.msra.mxu0 %v823
  %842 = vmatpush.msra.mxu0 %v821
  %843 = vmatpush.msra.mxu0 %v819
  %844 = vmatpush.msra.mxu0 %v817
  %845 = vmatpush.msra.mxu0 %v815
  %846 = vmatpush.msra.mxu0 %v813
  %847 = vmatpush.msra.mxu0 %v811
  %848 = vmatpush.msra.mxu0 %v809
  %849 = vmatpush.msra.mxu0 %v807
  %850 = vmatpush.msra.mxu0 %v805
  %851 = vmatpush.msra.mxu0 %v803
  %852 = vmatpush.msra.mxu0 %v801
  %853 = vmatmul.f32.gmra.mxu0 %v833
  %v854 = vpop.f32.mrf.mxu0
  %v855 = vadd.f32 0.0, %v854
  %856 = vmatmul.f32.gmra.mxu0 %v834
  %v857 = vpop.f32.mrf.mxu0
  %v858 = vadd.f32 0.0, %v857
  %859 = vmatmul.f32.gmra.mxu0 %v835
  %v860 = vpop.f32.mrf.mxu0
  %v861 = vadd.f32 0.0, %v860
  %862 = vmatmul.f32.gmra.mxu0 %v836
  %v863 = vpop.f32.mrf.mxu0
  %v864 = vadd.f32 0.0, %v863
  %865 = vdwg.mxu0
  %s866 = scalar_lea.vmem %s4, 2
  %v867 = vld [vmem:[%s866] sm:$0x1]
  %v869 = vperm.slane %v867, 0
  %v871 = vmul.f32 %v855, %v869
  %v872 = vmul.f32 %v858, %v869
  %v873 = vmul.f32 %v861, %v869
  %v874 = vmul.f32 %v864, %v869
  %v875 = vadd.f32 %v796, %v871
  %v876 = vadd.f32 %v797, %v872
  %v877 = vadd.f32 %v798, %v873
  %v878 = vadd.f32 %v799, %v874
  %879 = vrot.lane.b32.xlu0 %v628, 1
  %v880 = vpop.permute.xlu0 %879
  %881 = vrot.lane.b32.xlu0 %v629, 1
  %v882 = vpop.permute.xlu0 %881
  %883 = vrot.lane.b32.xlu0 %v630, 1
  %v884 = vpop.permute.xlu0 %883
  %885 = vrot.lane.b32.xlu0 %v631, 1
  %v886 = vpop.permute.xlu0 %885
  %887 = vrot.lane.b32.xlu0 %v632, 1
  %v888 = vpop.permute.xlu0 %887
  %889 = vrot.lane.b32.xlu0 %v633, 1
  %v890 = vpop.permute.xlu0 %889
  %891 = vrot.lane.b32.xlu0 %v634, 1
  %v892 = vpop.permute.xlu0 %891
  %893 = vrot.lane.b32.xlu0 %v635, 1
  %v894 = vpop.permute.xlu0 %893
  %895 = vrot.lane.b32.xlu0 %v636, 1
  %v896 = vpop.permute.xlu0 %895
  %897 = vrot.lane.b32.xlu0 %v637, 1
  %v898 = vpop.permute.xlu0 %897
  %899 = vrot.lane.b32.xlu0 %v638, 1
  %v900 = vpop.permute.xlu0 %899
  %901 = vrot.lane.b32.xlu0 %v639, 1
  %v902 = vpop.permute.xlu0 %901
  %903 = vrot.lane.b32.xlu0 %v640, 1
  %v904 = vpop.permute.xlu0 %903
  %905 = vrot.lane.b32.xlu0 %v641, 1
  %v906 = vpop.permute.xlu0 %905
  %907 = vrot.lane.b32.xlu0 %v642, 1
  %v908 = vpop.permute.xlu0 %907
  %909 = vrot.lane.b32.xlu0 %v643, 1
  %v910 = vpop.permute.xlu0 %909
  %s911 = scalar_lea.vmem %s3, 96
  %v912 = vld [vmem:[%s911] sm:$0xff]
  %v913 = vld [vmem:[%s911 + $0x8] sm:$0xff]
  %v914 = vld [vmem:[%s911 + $0x10] sm:$0xff]
  %v915 = vld [vmem:[%s911 + $0x18] sm:$0xff]
  %916 = vmatpush.msra.mxu0 %v910
  %917 = vmatpush.msra.mxu0 %v908
  %918 = vmatpush.msra.mxu0 %v906
  %919 = vmatpush.msra.mxu0 %v904
  %920 = vmatpush.msra.mxu0 %v902
  %921 = vmatpush.msra.mxu0 %v900
  %922 = vmatpush.msra.mxu0 %v898
  %923 = vmatpush.msra.mxu0 %v896
  %924 = vmatpush.msra.mxu0 %v894
  %925 = vmatpush.msra.mxu0 %v892
  %926 = vmatpush.msra.mxu0 %v890
  %927 = vmatpush.msra.mxu0 %v888
  %928 = vmatpush.msra.mxu0 %v886
  %929 = vmatpush.msra.mxu0 %v884
  %930 = vmatpush.msra.mxu0 %v882
  %931 = vmatpush.msra.mxu0 %v880
  %932 = vmatmul.f32.gmra.mxu0 %v912
  %v933 = vpop.f32.mrf.mxu0
  %v934 = vadd.f32 0.0, %v933
  %935 = vmatmul.f32.gmra.mxu0 %v913
  %v936 = vpop.f32.mrf.mxu0
  %v937 = vadd.f32 0.0, %v936
  %938 = vmatmul.f32.gmra.mxu0 %v914
  %v939 = vpop.f32.mrf.mxu0
  %v940 = vadd.f32 0.0, %v939
  %941 = vmatmul.f32.gmra.mxu0 %v915
  %v942 = vpop.f32.mrf.mxu0
  %v943 = vadd.f32 0.0, %v942
  %944 = vdwg.mxu0
  %s945 = scalar_lea.vmem %s4, 3
  %v946 = vld [vmem:[%s945] sm:$0x1]
  %v948 = vperm.slane %v946, 0
  %v950 = vmul.f32 %v934, %v948
  %v951 = vmul.f32 %v937, %v948
  %v952 = vmul.f32 %v940, %v948
  %v953 = vmul.f32 %v943, %v948
  %v954 = vadd.f32 %v875, %v950
  %v955 = vadd.f32 %v876, %v951
  %v956 = vadd.f32 %v877, %v952
  %v957 = vadd.f32 %v878, %v953
  %s958 = scalar_lea.vmem %s3, 128
  %v959 = vld [vmem:[%s958] sm:$0xff]
  %v960 = vld [vmem:[%s958 + $0x8] sm:$0xff]
  %v961 = vld [vmem:[%s958 + $0x10] sm:$0xff]
  %v962 = vld [vmem:[%s958 + $0x18] sm:$0xff]
  %963 = vmatpush.msra.mxu0 %v643
  %964 = vmatpush.msra.mxu0 %v642
  %965 = vmatpush.msra.mxu0 %v641
  %966 = vmatpush.msra.mxu0 %v640
  %967 = vmatpush.msra.mxu0 %v639
  %968 = vmatpush.msra.mxu0 %v638
  %969 = vmatpush.msra.mxu0 %v637
  %970 = vmatpush.msra.mxu0 %v636
  %971 = vmatpush.msra.mxu0 %v635
  %972 = vmatpush.msra.mxu0 %v634
  %973 = vmatpush.msra.mxu0 %v633
  %974 = vmatpush.msra.mxu0 %v632
  %975 = vmatpush.msra.mxu0 %v631
  %976 = vmatpush.msra.mxu0 %v630
  %977 = vmatpush.msra.mxu0 %v629
  %978 = vmatpush.msra.mxu0 %v628
  %979 = vmatmul.f32.gmra.mxu0 %v959
  %v980 = vpop.f32.mrf.mxu0
  %v981 = vadd.f32 0.0, %v980
  %982 = vmatmul.f32.gmra.mxu0 %v960
  %v983 = vpop.f32.mrf.mxu0
  %v984 = vadd.f32 0.0, %v983
  %985 = vmatmul.f32.gmra.mxu0 %v961
  %v986 = vpop.f32.mrf.mxu0
  %v987 = vadd.f32 0.0, %v986
  %988 = vmatmul.f32.gmra.mxu0 %v962
  %v989 = vpop.f32.mrf.mxu0
  %v990 = vadd.f32 0.0, %v989
  %991 = vdwg.mxu0
  %s992 = scalar_lea.vmem %s4, 4
  %v993 = vld [vmem:[%s992] sm:$0x1]
  %v995 = vperm.slane %v993, 0
  %v997 = vmul.f32 %v981, %v995
  %v998 = vmul.f32 %v984, %v995
  %v999 = vmul.f32 %v987, %v995
  %v1000 = vmul.f32 %v990, %v995
  %v1001 = vadd.f32 %v954, %v997
  %v1002 = vadd.f32 %v955, %v998
  %v1003 = vadd.f32 %v956, %v999
  %v1004 = vadd.f32 %v957, %v1000
  %1005 = vrot.lane.b32.xlu0 %v628, 127
  %v1006 = vpop.permute.xlu0 %1005
  %1007 = vrot.lane.b32.xlu0 %v629, 127
  %v1008 = vpop.permute.xlu0 %1007
  %1009 = vrot.lane.b32.xlu0 %v630, 127
  %v1010 = vpop.permute.xlu0 %1009
  %1011 = vrot.lane.b32.xlu0 %v631, 127
  %v1012 = vpop.permute.xlu0 %1011
  %1013 = vrot.lane.b32.xlu0 %v632, 127
  %v1014 = vpop.permute.xlu0 %1013
  %1015 = vrot.lane.b32.xlu0 %v633, 127
  %v1016 = vpop.permute.xlu0 %1015
  %1017 = vrot.lane.b32.xlu0 %v634, 127
  %v1018 = vpop.permute.xlu0 %1017
  %1019 = vrot.lane.b32.xlu0 %v635, 127
  %v1020 = vpop.permute.xlu0 %1019
  %1021 = vrot.lane.b32.xlu0 %v636, 127
  %v1022 = vpop.permute.xlu0 %1021
  %1023 = vrot.lane.b32.xlu0 %v637, 127
  %v1024 = vpop.permute.xlu0 %1023
  %1025 = vrot.lane.b32.xlu0 %v638, 127
  %v1026 = vpop.permute.xlu0 %1025
  %1027 = vrot.lane.b32.xlu0 %v639, 127
  %v1028 = vpop.permute.xlu0 %1027
  %1029 = vrot.lane.b32.xlu0 %v640, 127
  %v1030 = vpop.permute.xlu0 %1029
  %1031 = vrot.lane.b32.xlu0 %v641, 127
  %v1032 = vpop.permute.xlu0 %1031
  %1033 = vrot.lane.b32.xlu0 %v642, 127
  %v1034 = vpop.permute.xlu0 %1033
  %1035 = vrot.lane.b32.xlu0 %v643, 127
  %v1036 = vpop.permute.xlu0 %1035
  %s1037 = scalar_lea.vmem %s3, 160
  %v1038 = vld [vmem:[%s1037] sm:$0xff]
  %v1039 = vld [vmem:[%s1037 + $0x8] sm:$0xff]
  %v1040 = vld [vmem:[%s1037 + $0x10] sm:$0xff]
  %v1041 = vld [vmem:[%s1037 + $0x18] sm:$0xff]
  %1042 = vmatpush.msra.mxu0 %v1036
  %1043 = vmatpush.msra.mxu0 %v1034
  %1044 = vmatpush.msra.mxu0 %v1032
  %1045 = vmatpush.msra.mxu0 %v1030
  %1046 = vmatpush.msra.mxu0 %v1028
  %1047 = vmatpush.msra.mxu0 %v1026
  %1048 = vmatpush.msra.mxu0 %v1024
  %1049 = vmatpush.msra.mxu0 %v1022
  %1050 = vmatpush.msra.mxu0 %v1020
  %1051 = vmatpush.msra.mxu0 %v1018
  %1052 = vmatpush.msra.mxu0 %v1016
  %1053 = vmatpush.msra.mxu0 %v1014
  %1054 = vmatpush.msra.mxu0 %v1012
  %1055 = vmatpush.msra.mxu0 %v1010
  %1056 = vmatpush.msra.mxu0 %v1008
  %1057 = vmatpush.msra.mxu0 %v1006
  %1058 = vmatmul.f32.gmra.mxu0 %v1038
  %v1059 = vpop.f32.mrf.mxu0
  %v1060 = vadd.f32 0.0, %v1059
  %1061 = vmatmul.f32.gmra.mxu0 %v1039
  %v1062 = vpop.f32.mrf.mxu0
  %v1063 = vadd.f32 0.0, %v1062
  %1064 = vmatmul.f32.gmra.mxu0 %v1040
  %v1065 = vpop.f32.mrf.mxu0
  %v1066 = vadd.f32 0.0, %v1065
  %1067 = vmatmul.f32.gmra.mxu0 %v1041
  %v1068 = vpop.f32.mrf.mxu0
  %v1069 = vadd.f32 0.0, %v1068
  %1070 = vdwg.mxu0
  %s1071 = scalar_lea.vmem %s4, 5
  %v1072 = vld [vmem:[%s1071] sm:$0x1]
  %v1074 = vperm.slane %v1072, 0
  %v1076 = vmul.f32 %v1060, %v1074
  %v1077 = vmul.f32 %v1063, %v1074
  %v1078 = vmul.f32 %v1066, %v1074
  %v1079 = vmul.f32 %v1069, %v1074
  %v1080 = vadd.f32 %v1001, %v1076
  %v1081 = vadd.f32 %v1002, %v1077
  %v1082 = vadd.f32 %v1003, %v1078
  %v1083 = vadd.f32 %v1004, %v1079
  %1084 = vrot.lane.b32.xlu0 %v628, 122
  %v1085 = vpop.permute.xlu0 %1084
  %1086 = vrot.lane.b32.xlu0 %v629, 122
  %v1087 = vpop.permute.xlu0 %1086
  %1088 = vrot.lane.b32.xlu0 %v630, 122
  %v1089 = vpop.permute.xlu0 %1088
  %1090 = vrot.lane.b32.xlu0 %v631, 122
  %v1091 = vpop.permute.xlu0 %1090
  %1092 = vrot.lane.b32.xlu0 %v632, 122
  %v1093 = vpop.permute.xlu0 %1092
  %1094 = vrot.lane.b32.xlu0 %v633, 122
  %v1095 = vpop.permute.xlu0 %1094
  %1096 = vrot.lane.b32.xlu0 %v634, 122
  %v1097 = vpop.permute.xlu0 %1096
  %1098 = vrot.lane.b32.xlu0 %v635, 122
  %v1099 = vpop.permute.xlu0 %1098
  %1100 = vrot.lane.b32.xlu0 %v636, 122
  %v1101 = vpop.permute.xlu0 %1100
  %1102 = vrot.lane.b32.xlu0 %v637, 122
  %v1103 = vpop.permute.xlu0 %1102
  %1104 = vrot.lane.b32.xlu0 %v638, 122
  %v1105 = vpop.permute.xlu0 %1104
  %1106 = vrot.lane.b32.xlu0 %v639, 122
  %v1107 = vpop.permute.xlu0 %1106
  %1108 = vrot.lane.b32.xlu0 %v640, 122
  %v1109 = vpop.permute.xlu0 %1108
  %1110 = vrot.lane.b32.xlu0 %v641, 122
  %v1111 = vpop.permute.xlu0 %1110
  %1112 = vrot.lane.b32.xlu0 %v642, 122
  %v1113 = vpop.permute.xlu0 %1112
  %1114 = vrot.lane.b32.xlu0 %v643, 122
  %v1115 = vpop.permute.xlu0 %1114
  %s1116 = scalar_lea.vmem %s3, 192
  %v1117 = vld [vmem:[%s1116] sm:$0xff]
  %v1118 = vld [vmem:[%s1116 + $0x8] sm:$0xff]
  %v1119 = vld [vmem:[%s1116 + $0x10] sm:$0xff]
  %v1120 = vld [vmem:[%s1116 + $0x18] sm:$0xff]
  %1121 = vmatpush.msra.mxu0 %v1115
  %1122 = vmatpush.msra.mxu0 %v1113
  %1123 = vmatpush.msra.mxu0 %v1111
  %1124 = vmatpush.msra.mxu0 %v1109
  %1125 = vmatpush.msra.mxu0 %v1107
  %1126 = vmatpush.msra.mxu0 %v1105
  %1127 = vmatpush.msra.mxu0 %v1103
  %1128 = vmatpush.msra.mxu0 %v1101
  %1129 = vmatpush.msra.mxu0 %v1099
  %1130 = vmatpush.msra.mxu0 %v1097
  %1131 = vmatpush.msra.mxu0 %v1095
  %1132 = vmatpush.msra.mxu0 %v1093
  %1133 = vmatpush.msra.mxu0 %v1091
  %1134 = vmatpush.msra.mxu0 %v1089
  %1135 = vmatpush.msra.mxu0 %v1087
  %1136 = vmatpush.msra.mxu0 %v1085
  %1137 = vmatmul.f32.gmra.mxu0 %v1117
  %v1138 = vpop.f32.mrf.mxu0
  %v1139 = vadd.f32 0.0, %v1138
  %1140 = vmatmul.f32.gmra.mxu0 %v1118
  %v1141 = vpop.f32.mrf.mxu0
  %v1142 = vadd.f32 0.0, %v1141
  %1143 = vmatmul.f32.gmra.mxu0 %v1119
  %v1144 = vpop.f32.mrf.mxu0
  %v1145 = vadd.f32 0.0, %v1144
  %1146 = vmatmul.f32.gmra.mxu0 %v1120
  %v1147 = vpop.f32.mrf.mxu0
  %v1148 = vadd.f32 0.0, %v1147
  %1149 = vdwg.mxu0
  %s1150 = scalar_lea.vmem %s4, 6
  %v1151 = vld [vmem:[%s1150] sm:$0x1]
  %v1153 = vperm.slane %v1151, 0
  %v1155 = vmul.f32 %v1139, %v1153
  %v1156 = vmul.f32 %v1142, %v1153
  %v1157 = vmul.f32 %v1145, %v1153
  %v1158 = vmul.f32 %v1148, %v1153
  %v1159 = vadd.f32 %v1080, %v1155
  %v1160 = vadd.f32 %v1081, %v1156
  %v1161 = vadd.f32 %v1082, %v1157
  %v1162 = vadd.f32 %v1083, %v1158
  %1163 = vrot.lane.b32.xlu0 %v628, 121
  %v1164 = vpop.permute.xlu0 %1163
  %1165 = vrot.lane.b32.xlu0 %v629, 121
  %v1166 = vpop.permute.xlu0 %1165
  %1167 = vrot.lane.b32.xlu0 %v630, 121
  %v1168 = vpop.permute.xlu0 %1167
  %1169 = vrot.lane.b32.xlu0 %v631, 121
  %v1170 = vpop.permute.xlu0 %1169
  %1171 = vrot.lane.b32.xlu0 %v632, 121
  %v1172 = vpop.permute.xlu0 %1171
  %1173 = vrot.lane.b32.xlu0 %v633, 121
  %v1174 = vpop.permute.xlu0 %1173
  %1175 = vrot.lane.b32.xlu0 %v634, 121
  %v1176 = vpop.permute.xlu0 %1175
  %1177 = vrot.lane.b32.xlu0 %v635, 121
  %v1178 = vpop.permute.xlu0 %1177
  %1179 = vrot.lane.b32.xlu0 %v636, 121
  %v1180 = vpop.permute.xlu0 %1179
  %1181 = vrot.lane.b32.xlu0 %v637, 121
  %v1182 = vpop.permute.xlu0 %1181
  %1183 = vrot.lane.b32.xlu0 %v638, 121
  %v1184 = vpop.permute.xlu0 %1183
  %1185 = vrot.lane.b32.xlu0 %v639, 121
  %v1186 = vpop.permute.xlu0 %1185
  %1187 = vrot.lane.b32.xlu0 %v640, 121
  %v1188 = vpop.permute.xlu0 %1187
  %1189 = vrot.lane.b32.xlu0 %v641, 121
  %v1190 = vpop.permute.xlu0 %1189
  %1191 = vrot.lane.b32.xlu0 %v642, 121
  %v1192 = vpop.permute.xlu0 %1191
  %1193 = vrot.lane.b32.xlu0 %v643, 121
  %v1194 = vpop.permute.xlu0 %1193
  %s1195 = scalar_lea.vmem %s3, 224
  %v1196 = vld [vmem:[%s1195] sm:$0xff]
  %v1197 = vld [vmem:[%s1195 + $0x8] sm:$0xff]
  %v1198 = vld [vmem:[%s1195 + $0x10] sm:$0xff]
  %v1199 = vld [vmem:[%s1195 + $0x18] sm:$0xff]
  %1200 = vmatpush.msra.mxu0 %v1194
  %1201 = vmatpush.msra.mxu0 %v1192
  %1202 = vmatpush.msra.mxu0 %v1190
  %1203 = vmatpush.msra.mxu0 %v1188
  %1204 = vmatpush.msra.mxu0 %v1186
  %1205 = vmatpush.msra.mxu0 %v1184
  %1206 = vmatpush.msra.mxu0 %v1182
  %1207 = vmatpush.msra.mxu0 %v1180
  %1208 = vmatpush.msra.mxu0 %v1178
  %1209 = vmatpush.msra.mxu0 %v1176
  %1210 = vmatpush.msra.mxu0 %v1174
  %1211 = vmatpush.msra.mxu0 %v1172
  %1212 = vmatpush.msra.mxu0 %v1170
  %1213 = vmatpush.msra.mxu0 %v1168
  %1214 = vmatpush.msra.mxu0 %v1166
  %1215 = vmatpush.msra.mxu0 %v1164
  %1216 = vmatmul.f32.gmra.mxu0 %v1196
  %v1217 = vpop.f32.mrf.mxu0
  %v1218 = vadd.f32 0.0, %v1217
  %1219 = vmatmul.f32.gmra.mxu0 %v1197
  %v1220 = vpop.f32.mrf.mxu0
  %v1221 = vadd.f32 0.0, %v1220
  %1222 = vmatmul.f32.gmra.mxu0 %v1198
  %v1223 = vpop.f32.mrf.mxu0
  %v1224 = vadd.f32 0.0, %v1223
  %1225 = vmatmul.f32.gmra.mxu0 %v1199
  %v1226 = vpop.f32.mrf.mxu0
  %v1227 = vadd.f32 0.0, %v1226
  %1228 = vdwg.mxu0
  %s1229 = scalar_lea.vmem %s4, 7
  %v1230 = vld [vmem:[%s1229] sm:$0x1]
  %v1232 = vperm.slane %v1230, 0
  %v1234 = vmul.f32 %v1218, %v1232
  %v1235 = vmul.f32 %v1221, %v1232
  %v1236 = vmul.f32 %v1224, %v1232
  %v1237 = vmul.f32 %v1227, %v1232
  %v1238 = vadd.f32 %v1159, %v1234
  %v1239 = vadd.f32 %v1160, %v1235
  %v1240 = vadd.f32 %v1161, %v1236
  %v1241 = vadd.f32 %v1162, %v1237
  %1242 = vrot.lane.b32.xlu0 %v628, 120
  %v1243 = vpop.permute.xlu0 %1242
  %1244 = vrot.lane.b32.xlu0 %v629, 120
  %v1245 = vpop.permute.xlu0 %1244
  %1246 = vrot.lane.b32.xlu0 %v630, 120
  %v1247 = vpop.permute.xlu0 %1246
  %1248 = vrot.lane.b32.xlu0 %v631, 120
  %v1249 = vpop.permute.xlu0 %1248
  %1250 = vrot.lane.b32.xlu0 %v632, 120
  %v1251 = vpop.permute.xlu0 %1250
  %1252 = vrot.lane.b32.xlu0 %v633, 120
  %v1253 = vpop.permute.xlu0 %1252
  %1254 = vrot.lane.b32.xlu0 %v634, 120
  %v1255 = vpop.permute.xlu0 %1254
  %1256 = vrot.lane.b32.xlu0 %v635, 120
  %v1257 = vpop.permute.xlu0 %1256
  %1258 = vrot.lane.b32.xlu0 %v636, 120
  %v1259 = vpop.permute.xlu0 %1258
  %1260 = vrot.lane.b32.xlu0 %v637, 120
  %v1261 = vpop.permute.xlu0 %1260
  %1262 = vrot.lane.b32.xlu0 %v638, 120
  %v1263 = vpop.permute.xlu0 %1262
  %1264 = vrot.lane.b32.xlu0 %v639, 120
  %v1265 = vpop.permute.xlu0 %1264
  %1266 = vrot.lane.b32.xlu0 %v640, 120
  %v1267 = vpop.permute.xlu0 %1266
  %1268 = vrot.lane.b32.xlu0 %v641, 120
  %v1269 = vpop.permute.xlu0 %1268
  %1270 = vrot.lane.b32.xlu0 %v642, 120
  %v1271 = vpop.permute.xlu0 %1270
  %1272 = vrot.lane.b32.xlu0 %v643, 120
  %v1273 = vpop.permute.xlu0 %1272
  %s1274 = scalar_lea.vmem %s3, 256
  %v1275 = vld [vmem:[%s1274] sm:$0xff]
  %v1276 = vld [vmem:[%s1274 + $0x8] sm:$0xff]
  %v1277 = vld [vmem:[%s1274 + $0x10] sm:$0xff]
  %v1278 = vld [vmem:[%s1274 + $0x18] sm:$0xff]
  %1279 = vmatpush.msra.mxu0 %v1273
  %1280 = vmatpush.msra.mxu0 %v1271
  %1281 = vmatpush.msra.mxu0 %v1269
  %1282 = vmatpush.msra.mxu0 %v1267
  %1283 = vmatpush.msra.mxu0 %v1265
  %1284 = vmatpush.msra.mxu0 %v1263
  %1285 = vmatpush.msra.mxu0 %v1261
  %1286 = vmatpush.msra.mxu0 %v1259
  %1287 = vmatpush.msra.mxu0 %v1257
  %1288 = vmatpush.msra.mxu0 %v1255
  %1289 = vmatpush.msra.mxu0 %v1253
  %1290 = vmatpush.msra.mxu0 %v1251
  %1291 = vmatpush.msra.mxu0 %v1249
  %1292 = vmatpush.msra.mxu0 %v1247
  %1293 = vmatpush.msra.mxu0 %v1245
  %1294 = vmatpush.msra.mxu0 %v1243
  %1295 = vmatmul.f32.gmra.mxu0 %v1275
  %v1296 = vpop.f32.mrf.mxu0
  %v1297 = vadd.f32 0.0, %v1296
  %1298 = vmatmul.f32.gmra.mxu0 %v1276
  %v1299 = vpop.f32.mrf.mxu0
  %v1300 = vadd.f32 0.0, %v1299
  %1301 = vmatmul.f32.gmra.mxu0 %v1277
  %v1302 = vpop.f32.mrf.mxu0
  %v1303 = vadd.f32 0.0, %v1302
  %1304 = vmatmul.f32.gmra.mxu0 %v1278
  %v1305 = vpop.f32.mrf.mxu0
  %v1306 = vadd.f32 0.0, %v1305
  %1307 = vdwg.mxu0
  %s1308 = scalar_lea.vmem %s4, 8
  %v1309 = vld [vmem:[%s1308] sm:$0x1]
  %v1311 = vperm.slane %v1309, 0
  %v1313 = vmul.f32 %v1297, %v1311
  %v1314 = vmul.f32 %v1300, %v1311
  %v1315 = vmul.f32 %v1303, %v1311
  %v1316 = vmul.f32 %v1306, %v1311
  %v1317 = vadd.f32 %v1238, %v1313
  %v1318 = vadd.f32 %v1239, %v1314
  %v1319 = vadd.f32 %v1240, %v1315
  %v1320 = vadd.f32 %v1241, %v1316
  %1321 = vst [vmem:[%s5] sm:$0xff] %v1317
  %1322 = vst [vmem:[%s5 + $0x8] sm:$0xff] %v1318
  %1323 = vst [vmem:[%s5 + $0x10] sm:$0xff] %v1319
  %1324 = vst [vmem:[%s5 + $0x18] sm:$0xff] %v1320
  // Predicated region
  $region22: #{bn_relu_conv.1} parent=0 // pred_check
    _
  $region23: #{bn_relu_conv.1} parent=0 // pred_check_branch
    %1326 = sbr.rel (0) target = $region25
  $region24: #{bn_relu_conv.1} parent=0 // pred_region
    _
  $region25: #{bn_relu_conv.1} parent=0 // pred_fallthru
    _
  // Predicated region
  $region26: #{bn_relu_conv.1} parent=0 // pred_check
    _
  $region27: #{bn_relu_conv.1} parent=0 // pred_check_branch
    %1328 = sbr.rel (0) target = $region29
  $region28: #{bn_relu_conv.1} parent=0 // pred_region
    _
  $region29: #{bn_relu_conv.1} parent=0 // pred_fallthru
    _

</llo_original>
